<compile_context>
chip_gen: v5e
topology: v5e:2x2
jax: 0.10.0
libtpu: 0.0.40
codegen_flags: <defaults>
</compile_context>

<pallas_src>
import math
from functools import partial

import jax
import jax.numpy as jnp
from jax.experimental import pallas as pl
from jax.experimental.pallas import tpu as pltpu


# ---------------------------------------------------------------------------
# Fused AttentionPool kernel (one (tb, L*E) batch tile per grid step)
# ---------------------------------------------------------------------------
def _attention_pool_kernel(x_ref, wblk_ref, r_ref, s_ref, o_ref):
    # x:    (tb, L*E)  lane-dense batch tile (VMEM)
    # wblk: (L*E, L)   block-diagonal copies of the query weight (VMEM-resident)
    # r:    (L, L*E)   0/1 expansion matrix (VMEM-resident)
    # s:    (L*E, E)   0/1 segment-sum matrix (VMEM-resident)
    # o:    (tb, E)
    x = x_ref[...]                                                      # (tb, 128)

    # Per-token logits via MXU: logits[b, l] = sum_e x[b, l, e] * w[e].
    logits = jnp.dot(x, wblk_ref[...], preferred_element_type=jnp.float32)  # (tb, L)

    # Max-stabilized softmax over the (tiny) L lane axis.
    m = jnp.max(logits, axis=-1, keepdims=True)                         # (tb, 1)
    p = jnp.exp(logits - m)                                             # (tb, L)
    denom = jnp.sum(p, axis=-1, keepdims=True)                          # (tb, 1)
    attn = p * pl.reciprocal(denom, approx=True)                        # (tb, L)

    # Broadcast attn over the E lanes of each token (MXU, 0/1 matrix), then pool:
    # pooled[b, e] = sum_l attn[b, l] * x[b, l, e]   (segment-sum via MXU, 0/1 matrix).
    attn_e = jnp.dot(attn, r_ref[...], preferred_element_type=jnp.float32)   # (tb, 128)
    pooled = jnp.dot(x * attn_e, s_ref[...], preferred_element_type=jnp.float32)  # (tb, E)

    o_ref[...] = pooled.astype(o_ref.dtype)


@partial(jax.jit, static_argnames=("block_b",))
def attention_pool(x, w, b=None, *, block_b=4096):
    """AttentionPool forward.

    x: (B, L, E) float32
    w: (1, E)    query weight (PyTorch nn.Linear(E, 1) layout)
    b: (1,)      query bias -- ignored: softmax over L is shift-invariant, so a
                 per-row-constant bias never changes the pooled output.
    returns: (B, E)
    """
    del b  # exact no-op for the forward output (softmax shift-invariance)
    B, L, E = x.shape
    x2d = x.reshape(B, L * E)                       # free, contiguous flatten

    # Constant helper matrices (built once per jit trace, stay VMEM-resident).
    eye_l = jnp.eye(L, dtype=x.dtype)
    wblk = (eye_l[:, None, :] * w.reshape(1, E, 1).astype(x.dtype)).reshape(L * E, L)
    r_mat = jnp.repeat(eye_l, E, axis=1)                                  # (L, L*E)
    s_mat = jnp.tile(jnp.eye(E, dtype=x.dtype), (L, 1))                   # (L*E, E)

    tb = min(block_b, B)                            # keep >=2 grid steps for v7x megacore
    grid = (pl.cdiv(B, tb),)

    return pl.pallas_call(
        _attention_pool_kernel,
        out_shape=jax.ShapeDtypeStruct((B, E), x.dtype),
        grid=grid,
        in_specs=[
            pl.BlockSpec((tb, L * E), lambda i: (i, 0)),      # lane-dense batch tile
            pl.BlockSpec((L * E, L), lambda i: (0, 0)),       # resident Wblk
            pl.BlockSpec((L, L * E), lambda i: (0, 0)),       # resident R
            pl.BlockSpec((L * E, E), lambda i: (0, 0)),       # resident S
        ],
        out_specs=pl.BlockSpec((tb, E), lambda i: (i, 0)),    # packed 2-D output
        compiler_params=pltpu.CompilerParams(
            dimension_semantics=("parallel",),
        ),
    )(x2d, wblk, r_mat, s_mat)


# ---------------------------------------------------------------------------
# Pure-JAX reference (explicit multiply+sum so the reference itself stays f32-exact)
# ---------------------------------------------------------------------------
def reference_attention_pool(x, w, b):
    logits = jnp.sum(x * w.reshape(1, 1, -1), axis=-1) + b[0]   # (B, L)
    attn = jax.nn.softmax(logits, axis=-1)[..., None]           # (B, L, 1)
    return jnp.sum(x * attn, axis=1)                            # (B, E)


if __name__ == "__main__":
    B, L, E = 16, 8, 16   # embed_dim=16 (module default); small deterministic demo shapes

    root = jax.random.PRNGKey(0)
    kx, kw, kb = jax.random.split(root, 3)

    # Mimic PyTorch nn.Linear(E, 1) default init: U(-1/sqrt(E), 1/sqrt(E)).
    bound = 1.0 / math.sqrt(E)
    w = jax.random.uniform(kw, (1, E), jnp.float32, -bound, bound)
    b = jax.random.uniform(kb, (1,), jnp.float32, -bound, bound)
    x = jax.random.normal(kx, (B, L, E), jnp.float32)

    # block_b=8 -> grid=(2,): exercises the batch-tiled, double-buffered pipeline.
    pooled = attention_pool(x, w, b, block_b=8)
    pooled = jax.block_until_ready(pooled)

    ref = reference_attention_pool(x, w, b)
    assert pooled.shape == (B, E)
    # Expected error ~1e-5 (f32 MXU path + approx reciprocal); the loose bound below only
    # guards against structural bugs (wrong matrices / indexing would give O(0.1-1) error).
    err = float(jnp.max(jnp.abs(pooled - ref)))
    assert err < 5e-2, err
    print("KERNEL_OK")
</pallas_src>

<mosaic_0001>
module attributes {stable_mosaic.version = 11 : i64} {
  func.func @_attention_pool_kernel(%arg0: i32, %arg1: memref<8x128xf32, #tpu.memory_space<vmem>>, %arg2: memref<128x8xf32, #tpu.memory_space<vmem>>, %arg3: memref<8x128xf32, #tpu.memory_space<vmem>>, %arg4: memref<128x16xf32, #tpu.memory_space<vmem>>, %arg5: memref<8x16xf32, #tpu.memory_space<vmem>>) attributes {dimension_semantics = [#tpu.dimension_semantics<parallel>], iteration_bounds = array<i64: 2>, scalar_prefetch = 0 : i64, scratch_operands = 0 : i64, tpu.core_type = #tpu.core_type<tc>, window_params = [{transform_indices = @transform_0, window_bounds = array<i64: 8, 128>}, {pipeline_mode = #tpu.pipeline_mode<synchronous>, transform_indices = @transform_1, window_bounds = array<i64: 128, 8>}, {pipeline_mode = #tpu.pipeline_mode<synchronous>, transform_indices = @transform_2, window_bounds = array<i64: 8, 128>}, {pipeline_mode = #tpu.pipeline_mode<synchronous>, transform_indices = @transform_3, window_bounds = array<i64: 128, 16>}, {transform_indices = @transform_4, window_bounds = array<i64: 8, 16>}]} {
    %c0 = arith.constant 0 : index
    %c0_0 = arith.constant 0 : index
    %0 = vector.load %arg1[%c0, %c0_0] : memref<8x128xf32, #tpu.memory_space<vmem>>, vector<8x128xf32>
    %c0_1 = arith.constant 0 : index
    %c0_2 = arith.constant 0 : index
    %1 = vector.load %arg2[%c0_1, %c0_2] : memref<128x8xf32, #tpu.memory_space<vmem>>, vector<128x8xf32>
    %cst = arith.constant dense<0.000000e+00> : vector<8x8xf32>
    %2 = tpu.matmul %0, %1, %cst {dimension_numbers = #tpu.dot_dimension_numbers<[1], [0], [0], [1], [0, 0, 1, 1], [], []>} : vector<8x128xf32>, vector<128x8xf32>, vector<8x8xf32> -> vector<8x8xf32>
    %cst_3 = arith.constant dense<0xFF800000> : vector<8xf32>
    %3 = vector.multi_reduction <maximumf>, %2, %cst_3 [1] : vector<8x8xf32> to vector<8xf32>
    %4 = vector.shape_cast %3 : vector<8xf32> to vector<8x1xf32>
    %5 = vector.broadcast %4 : vector<8x1xf32> to vector<8x8xf32>
    %6 = arith.subf %2, %5 : vector<8x8xf32>
    %7 = math.exp %6 : vector<8x8xf32>
    %cst_4 = arith.constant dense<0.000000e+00> : vector<8xf32>
    %8 = vector.multi_reduction <add>, %7, %cst_4 [1] : vector<8x8xf32> to vector<8xf32>
    %9 = vector.shape_cast %8 : vector<8xf32> to vector<8x1xf32>
    %10 = tpu.reciprocal %9 {approx = true} : vector<8x1xf32> -> vector<8x1xf32>
    %11 = vector.broadcast %10 : vector<8x1xf32> to vector<8x8xf32>
    %12 = arith.mulf %7, %11 : vector<8x8xf32>
    %c0_5 = arith.constant 0 : index
    %c0_6 = arith.constant 0 : index
    %13 = vector.load %arg3[%c0_5, %c0_6] : memref<8x128xf32, #tpu.memory_space<vmem>>, vector<8x128xf32>
    %cst_7 = arith.constant dense<0.000000e+00> : vector<8x128xf32>
    %14 = tpu.matmul %12, %13, %cst_7 {dimension_numbers = #tpu.dot_dimension_numbers<[1], [0], [0], [1], [0, 0, 1, 1], [], []>} : vector<8x8xf32>, vector<8x128xf32>, vector<8x128xf32> -> vector<8x128xf32>
    %15 = arith.mulf %0, %14 : vector<8x128xf32>
    %c0_8 = arith.constant 0 : index
    %c0_9 = arith.constant 0 : index
    %16 = vector.load %arg4[%c0_8, %c0_9] : memref<128x16xf32, #tpu.memory_space<vmem>>, vector<128x16xf32>
    %cst_10 = arith.constant dense<0.000000e+00> : vector<8x16xf32>
    %17 = tpu.matmul %15, %16, %cst_10 {dimension_numbers = #tpu.dot_dimension_numbers<[1], [0], [0], [1], [0, 0, 1, 1], [], []>} : vector<8x128xf32>, vector<128x16xf32>, vector<8x16xf32> -> vector<8x16xf32>
    %c0_11 = arith.constant 0 : index
    %c0_12 = arith.constant 0 : index
    %18 = vector.load %arg5[%c0_11, %c0_12] : memref<8x16xf32, #tpu.memory_space<vmem>>, vector<8x16xf32>
    tpu.vector_store %arg5[%c0_11, %c0_12], %17 {strides = array<i32>} : memref<8x16xf32, #tpu.memory_space<vmem>>, vector<8x16xf32>,
    return
  }
  func.func @transform_0(%arg0: i32) -> (i32, i32) {
    %c0_i32 = arith.constant 0 : i32
    %c0_i32_0 = arith.constant 0 : i32
    return %arg0, %c0_i32 : i32, i32
  }
  func.func @transform_1(%arg0: i32) -> (i32, i32) {
    %c0_i32 = arith.constant 0 : i32
    %c0_i32_0 = arith.constant 0 : i32
    %c0_i32_1 = arith.constant 0 : i32
    return %c0_i32, %c0_i32_0 : i32, i32
  }
  func.func @transform_2(%arg0: i32) -> (i32, i32) {
    %c0_i32 = arith.constant 0 : i32
    %c0_i32_0 = arith.constant 0 : i32
    %c0_i32_1 = arith.constant 0 : i32
    return %c0_i32, %c0_i32_0 : i32, i32
  }
  func.func @transform_3(%arg0: i32) -> (i32, i32) {
    %c0_i32 = arith.constant 0 : i32
    %c0_i32_0 = arith.constant 0 : i32
    %c0_i32_1 = arith.constant 0 : i32
    return %c0_i32, %c0_i32_0 : i32, i32
  }
  func.func @transform_4(%arg0: i32) -> (i32, i32) {
    %c0_i32 = arith.constant 0 : i32
    %c0_i32_0 = arith.constant 0 : i32
    return %arg0, %c0_i32 : i32, i32
  }
}

</mosaic_0001>

<llo_original>
// kernel: attention_pool.1
$region0: #{attention_pool.1}
  #allocation0 [shape = 'u32[]', space=smem, size = 0x4, offset = 0x4, fixed_abs, tag = 'smem constant byte address 0x4 - core index']
  #allocation1 [shape = 'u32[72,128]{1,0:T(1,128)}', space=vmem, size = 0x9000, scoped, tag = 'internal scratch']
  %s0 = inlined_call_operand.vmem [shape: f32[16,128], index: 0, kind: input, shape index: {}]
  %s1 = inlined_call_operand.vmem [shape: f32[128,8], index: 1, kind: input, shape index: {}]
  %s2 = inlined_call_operand.vmem [shape: f32[8,128], index: 2, kind: input, shape index: {}]
  %s3 = inlined_call_operand.vmem [shape: f32[128,16], index: 3, kind: input, shape index: {}]
  %s4 = inlined_call_operand.hbm [shape: f32[16,16], index: 4, kind: output, shape index: {}]
  %s5 = sld [smem:[#allocation0]]
  $region49: #{attention_pool.1} parent=0
    _
  %s7 = ssub.s32 1, %s5
  %s8 = scalar_select 0, %s7, %s5
  $region1: #{attention_pool.1} parent=0
    #allocation2 [shape = 'u8[8192]{0}', space=vmem, size = 0x2000, scoped, tag = 'output window, operand 0']
    #allocation3 [shape = 's32[2]{0}', space=sflag, size = 0x8, scoped, tag = 'scoped memory for attention_pool.1']
    %9 = vsyncpa [#allocation3], 0
    %s10 = scalar_lea.sflag [#allocation3], 1
    %11 = vsyncpa %s10, 0
    loop: start=0, step=1, limit=4
    $region2: #{attention_pool.1} parent=1 // loop_pre_header
      _
    $region3: #{attention_pool.1} parent=1 // loop_header
      %s13 = sphi 0, %s17
      %p14 = scmp.ge.s32.totalorder %s13, 4
      %s23 = sphi 0, %s25
      %s26 = sphi 0, %s23
      %s27 = sphi 0, %s26
      %s43 = sphi 0, %s27
      %s47 = sphi 0, %s47
      %s49 = sphi 0, %s47
      %s50 = sphi 0, %s49
      %s64 = sphi 0, %s50
      %s68 = sphi 0, %s68
      %s70 = sphi 0, %s68
      %s71 = sphi 0, %s70
      %s85 = sphi 0, %s71
      %s89 = sphi 0, %s89
      %s91 = sphi 0, %s89
      %s92 = sphi 0, %s91
      %s106 = sphi 0, %s92
      %s112 = sphi 0, %s114
      %s115 = sphi 0, %s112
      %s116 = sphi 0, %s115
      %s132 = sphi 0, %s116
    $region4: #{attention_pool.1} parent=1 // loop_header_branch
      %16 = sbr.rel (%p14) target = $region8
    $region5: #{attention_pool.1} parent=1 // loop_body
      %s18 = ssub.s32 %s13, 1
      %s19 = ssub.s32 %s13, 2
      %s20 = sadd.s32 %s13, 1
      %s21 = ssub.s32 %s13, %s20
      %p22 = scmp.eq.s32.totalorder %s21, 0
      %s24 = sadd.s32 %s23, 1
      %s25 = scalar_select %p22, %s23, %s24
      %p28 = pneg %p22
      %p29 = scmp.eq.s32.totalorder %s13, 1
      %p30 = por %p28, %p29
      %p31 = scmp.ne.s32.totalorder %s23, %s26
      %p32 = scmp.eq.s32.totalorder %s13, 0
      %p33 = por %p31, %p32
      %p34 = scmp.ne.s32.totalorder %s23, %s26
      %p35 = scmp.eq.s32.totalorder %s18, 1
      %p36 = por %p34, %p35
      %p37 = scmp.ne.s32.totalorder %s26, %s27
      %p38 = scmp.eq.s32.totalorder %s18, 0
      %p39 = por %p37, %p38
      %p40 = scmp.ne.s32.totalorder %s26, %s27
      %p41 = scmp.eq.s32.totalorder %s19, 1
      %p42 = por %p40, %p41
      %p44 = scmp.ne.s32.totalorder %s27, %s43
      %p45 = scmp.eq.s32.totalorder %s19, 0
      %p46 = por %p44, %p45
      %s48 = sadd.s32 %s47, 1
      %p51 = scmp.eq.s32.totalorder %s13, 1
      %p52 = scmp.ne.s32.totalorder %s47, %s49
      %p53 = scmp.eq.s32.totalorder %s13, 0
      %p54 = por %p52, %p53
      %p55 = scmp.ne.s32.totalorder %s47, %s49
      %p56 = scmp.eq.s32.totalorder %s18, 1
      %p57 = por %p55, %p56
      %p58 = scmp.ne.s32.totalorder %s49, %s50
      %p59 = scmp.eq.s32.totalorder %s18, 0
      %p60 = por %p58, %p59
      %p61 = scmp.ne.s32.totalorder %s49, %s50
      %p62 = scmp.eq.s32.totalorder %s19, 1
      %p63 = por %p61, %p62
      %p65 = scmp.ne.s32.totalorder %s50, %s64
      %p66 = scmp.eq.s32.totalorder %s19, 0
      %p67 = por %p65, %p66
      %s69 = sadd.s32 %s68, 1
      %p72 = scmp.eq.s32.totalorder %s13, 1
      %p73 = scmp.ne.s32.totalorder %s68, %s70
      %p74 = scmp.eq.s32.totalorder %s13, 0
      %p75 = por %p73, %p74
      %p76 = scmp.ne.s32.totalorder %s68, %s70
      %p77 = scmp.eq.s32.totalorder %s18, 1
      %p78 = por %p76, %p77
      %p79 = scmp.ne.s32.totalorder %s70, %s71
      %p80 = scmp.eq.s32.totalorder %s18, 0
      %p81 = por %p79, %p80
      %p82 = scmp.ne.s32.totalorder %s70, %s71
      %p83 = scmp.eq.s32.totalorder %s19, 1
      %p84 = por %p82, %p83
      %p86 = scmp.ne.s32.totalorder %s71, %s85
      %p87 = scmp.eq.s32.totalorder %s19, 0
      %p88 = por %p86, %p87
      %s90 = sadd.s32 %s89, 1
      %p93 = scmp.eq.s32.totalorder %s13, 1
      %p94 = scmp.ne.s32.totalorder %s89, %s91
      %p95 = scmp.eq.s32.totalorder %s13, 0
      %p96 = por %p94, %p95
      %p97 = scmp.ne.s32.totalorder %s89, %s91
      %p98 = scmp.eq.s32.totalorder %s18, 1
      %p99 = por %p97, %p98
      %p100 = scmp.ne.s32.totalorder %s91, %s92
      %p101 = scmp.eq.s32.totalorder %s18, 0
      %p102 = por %p100, %p101
      %p103 = scmp.ne.s32.totalorder %s91, %s92
      %p104 = scmp.eq.s32.totalorder %s19, 1
      %p105 = por %p103, %p104
      %p107 = scmp.ne.s32.totalorder %s92, %s106
      %p108 = scmp.eq.s32.totalorder %s19, 0
      %p109 = por %p107, %p108
      %s110 = ssub.s32 %s13, %s20
      %p111 = scmp.eq.s32.totalorder %s110, 0
      %s113 = sadd.s32 %s112, 1
      %s114 = scalar_select %p111, %s112, %s113
      %p117 = pneg %p111
      %p118 = scmp.eq.s32.totalorder %s13, 1
      %p119 = por %p117, %p118
      %p120 = scmp.ne.s32.totalorder %s112, %s115
      %p121 = scmp.eq.s32.totalorder %s13, 0
      %p122 = por %p120, %p121
      %p123 = scmp.ne.s32.totalorder %s112, %s115
      %p124 = scmp.eq.s32.totalorder %s18, 1
      %p125 = por %p123, %p124
      %p126 = scmp.ne.s32.totalorder %s115, %s116
      %p127 = scmp.eq.s32.totalorder %s18, 0
      %p128 = por %p126, %p127
      %p129 = scmp.ne.s32.totalorder %s115, %s116
      %p130 = scmp.eq.s32.totalorder %s19, 1
      %p131 = por %p129, %p130
      %p133 = scmp.ne.s32.totalorder %s116, %s132
      %p134 = scmp.eq.s32.totalorder %s19, 0
      %p135 = por %p133, %p134
      %p136 = scmp.le.s32.totalorder 1, %s13
      %p137 = scmp.lt.s32.totalorder %s13, 3
      %p138 = pnand %p136, %p137
      %p139 = pneg %p138
      // Predicated region
      $region9: #{attention_pool.1} parent=5 // pred_check
        _
      $region10: #{attention_pool.1} parent=5 // pred_check_branch
        %141 = sbr.rel (%p138) target = $region12
      $region11: #{attention_pool.1} parent=5 // pred_region
        %s142 = ssub.s32 %s13, 1
        // Predicated region
        $region13: #{attention_pool.1} parent=11 // pred_check
          %p143 = pneg %p60
        $region14: #{attention_pool.1} parent=11 // pred_check_branch
          %145 = sbr.rel (%p143) target = $region16
        $region15: #{attention_pool.1} parent=11 // pred_region
          _
        $region16: #{attention_pool.1} parent=11 // pred_fallthru
          _
        // Predicated region
        $region17: #{attention_pool.1} parent=11 // pred_check
          %p146 = pneg %p81
        $region18: #{attention_pool.1} parent=11 // pred_check_branch
          %148 = sbr.rel (%p146) target = $region20
        $region19: #{attention_pool.1} parent=11 // pred_region
          _
        $region20: #{attention_pool.1} parent=11 // pred_fallthru
          _
        // Predicated region
        $region21: #{attention_pool.1} parent=11 // pred_check
          %p149 = pneg %p102
        $region22: #{attention_pool.1} parent=11 // pred_check_branch
          %151 = sbr.rel (%p149) target = $region24
        $region23: #{attention_pool.1} parent=11 // pred_region
          _
        $region24: #{attention_pool.1} parent=11 // pred_fallthru
          _
      $region12: #{attention_pool.1} parent=5 // pred_fallthru
        _
      %p152 = scmp.lt.s32.totalorder %s13, 2
      // Predicated region
      $region25: #{attention_pool.1} parent=5 // pred_check
        %p153 = pneg %p152
      $region26: #{attention_pool.1} parent=5 // pred_check_branch
        %155 = sbr.rel (%p153) target = $region28
      $region27: #{attention_pool.1} parent=5 // pred_region
        // Predicated region
        $region29: #{attention_pool.1} parent=27 // pred_check
          %p156 = pneg %p33
        $region30: #{attention_pool.1} parent=27 // pred_check_branch
          %158 = sbr.rel (%p156) target = $region32
        $region31: #{attention_pool.1} parent=27 // pred_region
          %p159 = scmp.lt.s32.totalorder %s13, 1
          %s160 = scalar_select %p159, %s13, 1
          %s161 = smul.addr %s160, 8
          %s162 = scalar_lea.vmem %s0, %s161
        $region32: #{attention_pool.1} parent=27 // pred_fallthru
          _
      $region28: #{attention_pool.1} parent=5 // pred_fallthru
        _
      %p163 = scmp.le.s32.totalorder 1, %s13
      %p164 = scmp.lt.s32.totalorder %s13, 3
      %p165 = pnand %p163, %p164
      %p166 = pneg %p165
      // Predicated region
      $region33: #{attention_pool.1} parent=5 // pred_check
        _
      $region34: #{attention_pool.1} parent=5 // pred_check_branch
        %168 = sbr.rel (%p165) target = $region36
      $region35: #{attention_pool.1} parent=5 // pred_region
        %s169 = ssub.s32 %s13, 1
        %p170 = scmp.lt.s32.totalorder %s18, 1
        %s171 = scalar_select %p170, %s18, 1
        %s172 = smul.addr %s171, 8
        %s173 = scalar_lea.vmem %s0, %s172
        %p174 = pneg %p39
        %p175 = pneg %p36
        %p176 = pneg %p60
        %p177 = pneg %p57
        %p178 = pneg %p81
        %p179 = pneg %p78
        %p180 = pneg %p102
        %p181 = pneg %p99
        %p182 = pneg %p128
        %p183 = pneg %p125
        %s184 = sand.u32 %s115, 1
        %s185 = scalar_lea.sflag [#allocation3], %s184
        %s186 = sand.u32 %s115, 1
        %s187 = smul.addr %s186, 8
        %s188 = scalar_lea.vmem [#allocation2], %s187
        %p189 = scmp.lt.s32.totalorder %s18, 1
        %s190 = scalar_select %p189, %s18, 1
        %s191 = smul.addr %s190, 8
        %s192 = scalar_lea.vmem %s0, %s191
        %v193 = vld [vmem:[%s192] sm:$0xff]
        %v194 = vld [vmem:[%s1] sm:$0xff]
        %v195 = vld [vmem:[%s1 + $0x8] sm:$0xff]
        %v196 = vld [vmem:[%s1 + $0x10] sm:$0xff]
        %v197 = vld [vmem:[%s1 + $0x18] sm:$0xff]
        %v198 = vld [vmem:[%s1 + $0x20] sm:$0xff]
        %v199 = vld [vmem:[%s1 + $0x28] sm:$0xff]
        %v200 = vld [vmem:[%s1 + $0x30] sm:$0xff]
        %v201 = vld [vmem:[%s1 + $0x38] sm:$0xff]
        %v202 = vld [vmem:[%s1 + $0x40] sm:$0xff]
        %v203 = vld [vmem:[%s1 + $0x48] sm:$0xff]
        %v204 = vld [vmem:[%s1 + $0x50] sm:$0xff]
        %v205 = vld [vmem:[%s1 + $0x58] sm:$0xff]
        %v206 = vld [vmem:[%s1 + $0x60] sm:$0xff]
        %v207 = vld [vmem:[%s1 + $0x68] sm:$0xff]
        %v208 = vld [vmem:[%s1 + $0x70] sm:$0xff]
        %v209 = vld [vmem:[%s1 + $0x78] sm:$0xff]
        %210 = vmatpush.msra.mxu0 %v209
        %211 = vmatpush.msra.mxu0 %v208
        %212 = vmatpush.msra.mxu0 %v207
        %213 = vmatpush.msra.mxu0 %v206
        %214 = vmatpush.msra.mxu0 %v205
        %215 = vmatpush.msra.mxu0 %v204
        %216 = vmatpush.msra.mxu0 %v203
        %217 = vmatpush.msra.mxu0 %v202
        %218 = vmatpush.msra.mxu0 %v201
        %219 = vmatpush.msra.mxu0 %v200
        %220 = vmatpush.msra.mxu0 %v199
        %221 = vmatpush.msra.mxu0 %v198
        %222 = vmatpush.msra.mxu0 %v197
        %223 = vmatpush.msra.mxu0 %v196
        %224 = vmatpush.msra.mxu0 %v195
        %225 = vmatpush.msra.mxu0 %v194
        %226 = vmatmul.f32.gmra.mxu0 %v193
        %v227 = vpop.f32.mrf.mxu0
        %v228 = vadd.f32 0.0, %v227
        %229 = vdwg.mxu0
        %vm230 = vcmask 64512
        %v231 = vsel %vm230, %v228, -inf
        %232 = vmax.xlane.f32.xlu0 %v231
        %v233 = vpop.xlane.xlu0 %232
        %v234 = vsub.f32 %v228, %v233
        %v235 = vmul.f32 %v234, 1.442695
        %v236 = vpow.pop %v235
        %v237 = vsel %vm230, %v236, 0.0
        %238 = vadd.xlane.f32.xlu0 %v237
        %v239 = vpop.xlane.xlu0 %238
        %v240 = vrcp.pop %v239
        %v241 = vmul.f32 %v236, %v240
        %v242 = vld [vmem:[%s2] sm:$0xff]
        %v244 = vsel %vm230, %v241, 0
        %246 = vmatpush.msra.mxu0 0.0
        %247 = vmatpush.msra.mxu0 0.0
        %248 = vmatpush.msra.mxu0 0.0
        %249 = vmatpush.msra.mxu0 0.0
        %250 = vmatpush.msra.mxu0 0.0
        %251 = vmatpush.msra.mxu0 0.0
        %252 = vmatpush.msra.mxu0 0.0
        %253 = vmatpush.msra.mxu0 0.0
        %254 = vmatpush.msra.mxu0 0.0
        %255 = vmatpush.msra.mxu0 0.0
        %256 = vmatpush.msra.mxu0 0.0
        %257 = vmatpush.msra.mxu0 0.0
        %258 = vmatpush.msra.mxu0 0.0
        %259 = vmatpush.msra.mxu0 0.0
        %260 = vmatpush.msra.mxu0 0.0
        %261 = vmatpush.msra.mxu0 %v242
        %262 = vmatmul.f32.gmra.mxu0 %v244
        %v263 = vpop.f32.mrf.mxu0
        %v264 = vadd.f32 0.0, %v263
        %265 = vdwg.mxu0
        %v266 = vmul.f32 %v193, %v264
        %v267 = vld [vmem:[%s3] sm:$0xff]
        %v268 = vld [vmem:[%s3 + $0x8] sm:$0xff]
        %v269 = vld [vmem:[%s3 + $0x10] sm:$0xff]
        %v270 = vld [vmem:[%s3 + $0x18] sm:$0xff]
        %v271 = vld [vmem:[%s3 + $0x20] sm:$0xff]
        %v272 = vld [vmem:[%s3 + $0x28] sm:$0xff]
        %v273 = vld [vmem:[%s3 + $0x30] sm:$0xff]
        %v274 = vld [vmem:[%s3 + $0x38] sm:$0xff]
        %v275 = vld [vmem:[%s3 + $0x40] sm:$0xff]
        %v276 = vld [vmem:[%s3 + $0x48] sm:$0xff]
        %v277 = vld [vmem:[%s3 + $0x50] sm:$0xff]
        %v278 = vld [vmem:[%s3 + $0x58] sm:$0xff]
        %v279 = vld [vmem:[%s3 + $0x60] sm:$0xff]
        %v280 = vld [vmem:[%s3 + $0x68] sm:$0xff]
        %v281 = vld [vmem:[%s3 + $0x70] sm:$0xff]
        %v282 = vld [vmem:[%s3 + $0x78] sm:$0xff]
        %283 = vmatpush.msra.mxu0 %v282
        %284 = vmatpush.msra.mxu0 %v281
        %285 = vmatpush.msra.mxu0 %v280
        %286 = vmatpush.msra.mxu0 %v279
        %287 = vmatpush.msra.mxu0 %v278
        %288 = vmatpush.msra.mxu0 %v277
        %289 = vmatpush.msra.mxu0 %v276
        %290 = vmatpush.msra.mxu0 %v275
        %291 = vmatpush.msra.mxu0 %v274
        %292 = vmatpush.msra.mxu0 %v273
        %293 = vmatpush.msra.mxu0 %v272
        %294 = vmatpush.msra.mxu0 %v271
        %295 = vmatpush.msra.mxu0 %v270
        %296 = vmatpush.msra.mxu0 %v269
        %297 = vmatpush.msra.mxu0 %v268
        %298 = vmatpush.msra.mxu0 %v267
        %299 = vmatmul.f32.gmra.mxu0 %v266
        %v300 = vpop.f32.mrf.mxu0
        %v301 = vadd.f32 0.0, %v300
        %302 = vdwg.mxu0
        %vm303 = vcmask 130048
        %304 = vst.msk [vmem:[%s188] sm:$0xff] %vm303, %v301
        %s305 = sand.u32 %s115, 1
        %s306 = scalar_lea.sflag [#allocation3], %s305
        %s307 = sand.u32 %s115, 1
        %s308 = smul.addr %s307, 8
        %s309 = scalar_lea.vmem [#allocation2], %s308
        // Predicated region
        $region37: #{attention_pool.1} parent=35 // pred_check
          %p310 = pneg %p125
        $region38: #{attention_pool.1} parent=35 // pred_check_branch
          %312 = sbr.rel (%p310) target = $region40
        $region39: #{attention_pool.1} parent=35 // pred_region
          %314 = vsyncadd %s306, 0
          %s315 = smul.addr %s18, 8
          %s316 = scalar_lea.hbm %s4, %s315
          %s318 = sshll.u32 %s309, 4
          %s319 = int_to_ptr.vmem [resolvable:$true] %s318
          %s320 = sshll.u32 %s316, 4
          %s321 = int_to_ptr.hbm [resolvable:$true] %s320
          %323 = dma.vmem_to_hbm [thread:$0]  %s319, 128, %s321, %s306
        $region40: #{attention_pool.1} parent=35 // pred_fallthru
          _
      $region36: #{attention_pool.1} parent=5 // pred_fallthru
        _
      %p324 = scmp.le.s32.totalorder 2, %s13
      // Predicated region
      $region41: #{attention_pool.1} parent=5 // pred_check
        %p325 = pneg %p324
      $region42: #{attention_pool.1} parent=5 // pred_check_branch
        %327 = sbr.rel (%p325) target = $region44
      $region43: #{attention_pool.1} parent=5 // pred_region
        %s328 = ssub.s32 %s13, 2
        // Predicated region
        $region45: #{attention_pool.1} parent=43 // pred_check
          %p329 = pneg %p131
        $region46: #{attention_pool.1} parent=43 // pred_check_branch
          %331 = sbr.rel (%p329) target = $region48
        $region47: #{attention_pool.1} parent=43 // pred_region
          %s332 = sand.u32 %s116, 1
          %s333 = scalar_lea.sflag [#allocation3], %s332
          %s334 = sand.u32 %s116, 1
          %s335 = smul.addr %s334, 8
          %s336 = scalar_lea.vmem [#allocation2], %s335
          %338 = dma.done %s333, 128
        $region48: #{attention_pool.1} parent=43 // pred_fallthru
          _
      $region44: #{attention_pool.1} parent=5 // pred_fallthru
        _
    $region6: #{attention_pool.1} parent=1 // loop_footer
      %s17 = sadd.s32 1, %s13
    $region7: #{attention_pool.1} parent=1 // loop_footer_branch
      %12 = sbr.rel target = $region3
    $region8: #{attention_pool.1} parent=1 // loop_exit
      _
    %339 = vsyncpa [#allocation3], 1
    %s340 = scalar_lea.sflag [#allocation3], 1
    %341 = vsyncpa %s340, 1

</llo_original>
